<compile_context>
chip_gen: v7x
topology: tpu7x:2x2x1
jax: 0.10.0
libtpu: 0.0.40
codegen_flags: <defaults>
</compile_context>

<pallas_src>
import functools

import jax
import jax.numpy as jnp
from jax.experimental import pallas as pl
from jax.experimental.pallas import tpu as pltpu


def _tversky_partials_kernel(x_ref, t_ref, o_ref, *, n_classes):
    # x_ref: (1, C, TR, 128) logits for one (batch, row-tile)
    # t_ref: (1, TR, 128)    integer labels for the same (batch, row-tile)
    # o_ref: (1, 1, 2, 128)  f32 per-lane partials: row 0 = TP, row 1 = sum(sigmoid)
    t = t_ref[0]                                   # (TR, 128), native int dtype
    tp = jnp.zeros((1, 128), jnp.float32)
    sum_s = jnp.zeros((1, 128), jnp.float32)
    # Fused per-class pass: only one sigmoid slice is live at a time, no
    # (C, TR, 128) intermediate and no int32 label copy.
    # TODO(synk): v7x-only tuning — bf16 compare/select path and MXU-offloaded
    # row reductions, to be applied only after a bundle dump confirms the
    # VALU slot is the critical unit there.
    for c in range(n_classes):                     # static unroll, C is small
        s_c = jax.nn.sigmoid(x_ref[0, c].astype(jnp.float32))     # (TR, 128)
        sum_s = sum_s + jnp.sum(s_c, axis=0, keepdims=True)
        tp = tp + jnp.sum(jnp.where(t == c, s_c, 0.0), axis=0, keepdims=True)
    o_ref[0, 0, 0:1, :] = tp
    o_ref[0, 0, 1:2, :] = sum_s


def _choose_tiling(nr, batch, tr_cap, min_steps=4):
    """Pick (TR, NR_pad): row-tile size and padded row count.

    * TR <= tr_cap (VMEM budget / the ~1024-row roofline knee),
    * TR is a multiple of 32 (sublane-aligned for f32 / bf16 / int8 tiles)
      unless it spans the full row extent,
    * the grid gets >= min_steps steps when the volume allows it (megacore).
    """
    desired_nj = max(1, -(-min_steps // batch))       # ceil(min_steps / batch)
    tr = min(tr_cap, -(-nr // desired_nj))            # ceil(nr / desired_nj)
    if tr >= nr:
        return nr, nr                                 # single full-extent tile
    tr = (tr // 32) * 32
    if tr < 32 or tr >= nr:
        return nr, nr
    nr_pad = -(-nr // tr) * tr                        # pad rows up to a multiple
    return tr, nr_pad


def tversky_loss(inputs, target, n_classes=3, eps=1.0, alpha=0.7, beta=0.3,
                 max_tile_rows=1024):
    B, C, D, H, W = inputs.shape
    assert C == n_classes
    S = D * H * W
    NR = -(-S // 128)                                 # lane-padded row count

    in_bytes = jnp.dtype(inputs.dtype).itemsize
    lbl_bytes = jnp.dtype(target.dtype).itemsize

    # VMEM budget per 128-lane row: double-buffered input blocks plus the live
    # in-kernel temporaries (one f32 class slice + one select result at a time
    # thanks to the fused per-class pass).  Stays well under the 16 MiB v5e
    # scoped-VMEM default; 1024 rows is also the measured roofline knee.
    bytes_per_row = (2 * (C * in_bytes + lbl_bytes) + 2 * 4) * 128
    vmem_cap_rows = max(32, ((12 << 20) // bytes_per_row) // 32 * 32)
    TR, NR_pad = _choose_tiling(NR, B, min(max_tile_rows, vmem_cap_rows))
    NJ = NR_pad // TR
    S_pad = NR_pad * 128

    # Layout-preserving reshapes; labels keep their incoming dtype (no extra
    # wrapper-side cast -> no extra HBM traffic).  bf16 logits are accepted
    # as-is and upcast per class slice inside the kernel.
    x3 = inputs.reshape(B, C, S)
    t2 = target.reshape(B, S)
    if S_pad != S:
        # Inert padding: sigmoid(-1e9) ~ 0 and label 0 contributes no TP; the
        # epilogue uses the true voxel count, so FP/FN are unaffected.
        # TODO(synk): mask the ragged tail in-kernel to avoid this HBM copy.
        x3 = jnp.pad(x3, ((0, 0), (0, 0), (0, S_pad - S)),
                     constant_values=-1e9)
        t2 = jnp.pad(t2, ((0, 0), (0, S_pad - S)), constant_values=0)
    x4 = x3.reshape(B, C, NR_pad, 128)
    t3 = t2.reshape(B, NR_pad, 128)

    kernel = functools.partial(_tversky_partials_kernel, n_classes=n_classes)
    cost = pl.CostEstimate(
        flops=int(5 * B * C * S_pad),
        transcendentals=int(B * C * S_pad),
        bytes_accessed=int(B * S_pad * (C * in_bytes + lbl_bytes)
                           + B * NJ * 2 * 128 * 4),
    )
    partials = pl.pallas_call(
        kernel,
        out_shape=jax.ShapeDtypeStruct((B, NJ, 2, 128), jnp.float32),
        grid=(B, NJ),
        in_specs=[
            pl.BlockSpec((1, C, TR, 128), lambda b, j: (b, 0, j, 0)),
            pl.BlockSpec((1, TR, 128), lambda b, j: (b, j, 0)),
        ],
        out_specs=pl.BlockSpec((1, 1, 2, 128), lambda b, j: (b, j, 0, 0)),
        compiler_params=pltpu.CompilerParams(
            dimension_semantics=("parallel", "parallel")),
        cost_estimate=cost,
    )(x4, t3)

    # Tiny scalar epilogue: final lane/tile reduction + Tversky formula.
    tp = jnp.sum(partials[:, :, 0, :])
    sum_s = jnp.sum(partials[:, :, 1, :])
    n_positions = jnp.float32(B * S)        # sum of one-hot target == #voxels
    fp = sum_s - tp                         # sum((1-t)*s) = sum(s) - TP
    fn = n_positions - tp                   # sum(t*(1-s)) = sum(t) - TP
    tversky = (tp + eps) / (tp + alpha * fp + beta * fn + eps)
    score = 1.0 - tversky / float(n_classes)
    return score  # torch.mean of a scalar is the scalar itself


def _reference(inputs, target, n_classes=3, eps=1.0, alpha=0.7, beta=0.3):
    s = jax.nn.sigmoid(inputs)
    onehot = jnp.transpose(
        jax.nn.one_hot(target, n_classes, dtype=jnp.float32), (0, 4, 1, 2, 3))
    i = s.reshape(-1)
    t = onehot.reshape(-1)
    TP = jnp.sum(i * t)
    FP = jnp.sum((1.0 - t) * i)
    FN = jnp.sum(t * (1.0 - i))
    tv = (TP + eps) / (TP + alpha * FP + beta * FN + eps)
    return 1.0 - tv / float(n_classes)


if __name__ == "__main__":
    key = jax.random.PRNGKey(0)
    k1, k2 = jax.random.split(key)

    B, C, D, H, W = 2, 3, 4, 8, 16           # small 3-D segmentation shapes
    logits = jax.random.normal(k1, (B, C, D, H, W), dtype=jnp.float32)
    labels = jax.random.randint(k2, (B, D, H, W), 0, C, dtype=jnp.int32)

    loss = tversky_loss(logits, labels, n_classes=C)
    loss = jax.block_until_ready(loss)

    ref = _reference(logits, labels, n_classes=C)
    assert jnp.allclose(loss, ref, atol=1e-5, rtol=1e-5), (loss, ref)
    print("KERNEL_OK")
</pallas_src>

<mosaic_0001>
module attributes {stable_mosaic.version = 11 : i64} {
  func.func @_tversky_partials_kernel(%arg0: i32, %arg1: i32, %arg2: memref<1x3x4x128xf32, #tpu.memory_space<vmem>>, %arg3: memref<1x4x128xi32, #tpu.memory_space<vmem>>, %arg4: memref<1x1x2x128xf32, #tpu.memory_space<vmem>>) attributes {dimension_semantics = [#tpu.dimension_semantics<parallel>, #tpu.dimension_semantics<parallel>], iteration_bounds = array<i64: 2, 1>, scalar_prefetch = 0 : i64, scratch_operands = 0 : i64, tpu.core_type = #tpu.core_type<tc>, window_params = [{transform_indices = @transform_0, window_bounds = array<i64: 1, 3, 4, 128>}, {transform_indices = @transform_1, window_bounds = array<i64: 1, 4, 128>}, {transform_indices = @transform_2, window_bounds = array<i64: 1, 1, 2, 128>}]} {
    %c0 = arith.constant 0 : index
    %c0_0 = arith.constant 0 : index
    %c0_1 = arith.constant 0 : index
    %0 = vector.load %arg3[%c0, %c0_0, %c0_1] : memref<1x4x128xi32, #tpu.memory_space<vmem>>, vector<1x4x128xi32>
    %1 = vector.shape_cast %0 : vector<1x4x128xi32> to vector<4x128xi32>
    %cst = arith.constant 0.000000e+00 : f32
    %2 = vector.broadcast %cst : f32 to vector<1x128xf32>
    %cst_2 = arith.constant 0.000000e+00 : f32
    %3 = vector.broadcast %cst_2 : f32 to vector<1x128xf32>
    %c0_3 = arith.constant 0 : index
    %c0_4 = arith.constant 0 : index
    %c0_5 = arith.constant 0 : index
    %c0_6 = arith.constant 0 : index
    %4 = vector.load %arg2[%c0_3, %c0_4, %c0_5, %c0_6] : memref<1x3x4x128xf32, #tpu.memory_space<vmem>>, vector<1x1x4x128xf32>
    %5 = vector.shape_cast %4 : vector<1x1x4x128xf32> to vector<4x128xf32>
    %6 = arith.negf %5 : vector<4x128xf32>
    %7 = math.exp %6 : vector<4x128xf32>
    %cst_7 = arith.constant 1.000000e+00 : f32
    %8 = vector.broadcast %cst_7 : f32 to vector<4x128xf32>
    %9 = arith.addf %8, %7 : vector<4x128xf32>
    %10 = arith.divf %8, %9 : vector<4x128xf32>
    %cst_8 = arith.constant dense<0.000000e+00> : vector<128xf32>
    %11 = vector.multi_reduction <add>, %10, %cst_8 [0] : vector<4x128xf32> to vector<128xf32>
    %12 = vector.shape_cast %11 : vector<128xf32> to vector<1x128xf32>
    %13 = arith.addf %3, %12 : vector<1x128xf32>
    %c0_i32 = arith.constant 0 : i32
    %14 = vector.broadcast %c0_i32 : i32 to vector<4x128xi32>
    %15 = arith.cmpi eq, %1, %14 : vector<4x128xi32>
    %cst_9 = arith.constant 0.000000e+00 : f32
    %16 = vector.broadcast %cst_9 : f32 to vector<4x128xf32>
    %17 = arith.select %15, %10, %16 : vector<4x128xi1>, vector<4x128xf32>
    %cst_10 = arith.constant dense<0.000000e+00> : vector<128xf32>
    %18 = vector.multi_reduction <add>, %17, %cst_10 [0] : vector<4x128xf32> to vector<128xf32>
    %19 = vector.shape_cast %18 : vector<128xf32> to vector<1x128xf32>
    %20 = arith.addf %2, %19 : vector<1x128xf32>
    %c0_11 = arith.constant 0 : index
    %c1 = arith.constant 1 : index
    %c0_12 = arith.constant 0 : index
    %c0_13 = arith.constant 0 : index
    %21 = vector.load %arg2[%c0_11, %c1, %c0_12, %c0_13] : memref<1x3x4x128xf32, #tpu.memory_space<vmem>>, vector<1x1x4x128xf32>
    %22 = vector.shape_cast %21 : vector<1x1x4x128xf32> to vector<4x128xf32>
    %23 = arith.negf %22 : vector<4x128xf32>
    %24 = math.exp %23 : vector<4x128xf32>
    %cst_14 = arith.constant 1.000000e+00 : f32
    %25 = vector.broadcast %cst_14 : f32 to vector<4x128xf32>
    %26 = arith.addf %25, %24 : vector<4x128xf32>
    %27 = arith.divf %25, %26 : vector<4x128xf32>
    %cst_15 = arith.constant dense<0.000000e+00> : vector<128xf32>
    %28 = vector.multi_reduction <add>, %27, %cst_15 [0] : vector<4x128xf32> to vector<128xf32>
    %29 = vector.shape_cast %28 : vector<128xf32> to vector<1x128xf32>
    %30 = arith.addf %13, %29 : vector<1x128xf32>
    %c1_i32 = arith.constant 1 : i32
    %31 = vector.broadcast %c1_i32 : i32 to vector<4x128xi32>
    %32 = arith.cmpi eq, %1, %31 : vector<4x128xi32>
    %cst_16 = arith.constant 0.000000e+00 : f32
    %33 = vector.broadcast %cst_16 : f32 to vector<4x128xf32>
    %34 = arith.select %32, %27, %33 : vector<4x128xi1>, vector<4x128xf32>
    %cst_17 = arith.constant dense<0.000000e+00> : vector<128xf32>
    %35 = vector.multi_reduction <add>, %34, %cst_17 [0] : vector<4x128xf32> to vector<128xf32>
    %36 = vector.shape_cast %35 : vector<128xf32> to vector<1x128xf32>
    %37 = arith.addf %20, %36 : vector<1x128xf32>
    %c0_18 = arith.constant 0 : index
    %c2 = arith.constant 2 : index
    %c0_19 = arith.constant 0 : index
    %c0_20 = arith.constant 0 : index
    %38 = vector.load %arg2[%c0_18, %c2, %c0_19, %c0_20] : memref<1x3x4x128xf32, #tpu.memory_space<vmem>>, vector<1x1x4x128xf32>
    %39 = vector.shape_cast %38 : vector<1x1x4x128xf32> to vector<4x128xf32>
    %40 = arith.negf %39 : vector<4x128xf32>
    %41 = math.exp %40 : vector<4x128xf32>
    %cst_21 = arith.constant 1.000000e+00 : f32
    %42 = vector.broadcast %cst_21 : f32 to vector<4x128xf32>
    %43 = arith.addf %42, %41 : vector<4x128xf32>
    %44 = arith.divf %42, %43 : vector<4x128xf32>
    %cst_22 = arith.constant dense<0.000000e+00> : vector<128xf32>
    %45 = vector.multi_reduction <add>, %44, %cst_22 [0] : vector<4x128xf32> to vector<128xf32>
    %46 = vector.shape_cast %45 : vector<128xf32> to vector<1x128xf32>
    %47 = arith.addf %30, %46 : vector<1x128xf32>
    %c2_i32 = arith.constant 2 : i32
    %48 = vector.broadcast %c2_i32 : i32 to vector<4x128xi32>
    %49 = arith.cmpi eq, %1, %48 : vector<4x128xi32>
    %cst_23 = arith.constant 0.000000e+00 : f32
    %50 = vector.broadcast %cst_23 : f32 to vector<4x128xf32>
    %51 = arith.select %49, %44, %50 : vector<4x128xi1>, vector<4x128xf32>
    %cst_24 = arith.constant dense<0.000000e+00> : vector<128xf32>
    %52 = vector.multi_reduction <add>, %51, %cst_24 [0] : vector<4x128xf32> to vector<128xf32>
    %53 = vector.shape_cast %52 : vector<128xf32> to vector<1x128xf32>
    %54 = arith.addf %37, %53 : vector<1x128xf32>
    %c0_25 = arith.constant 0 : index
    %c0_26 = arith.constant 0 : index
    %c0_27 = arith.constant 0 : index
    %c0_28 = arith.constant 0 : index
    %55 = vector.load %arg4[%c0_25, %c0_26, %c0_27, %c0_28] : memref<1x1x2x128xf32, #tpu.memory_space<vmem>>, vector<1x1x1x128xf32>
    %56 = vector.shape_cast %55 : vector<1x1x1x128xf32> to vector<1x128xf32>
    %57 = vector.shape_cast %54 : vector<1x128xf32> to vector<1x1x1x128xf32>
    tpu.vector_store %arg4[%c0_25, %c0_26, %c0_27, %c0_28], %57 {strides = array<i32>} : memref<1x1x2x128xf32, #tpu.memory_space<vmem>>, vector<1x1x1x128xf32>,
    %c0_29 = arith.constant 0 : index
    %c0_30 = arith.constant 0 : index
    %c1_31 = arith.constant 1 : index
    %c0_32 = arith.constant 0 : index
    %58 = vector.load %arg4[%c0_29, %c0_30, %c1_31, %c0_32] : memref<1x1x2x128xf32, #tpu.memory_space<vmem>>, vector<1x1x1x128xf32>
    %59 = vector.shape_cast %58 : vector<1x1x1x128xf32> to vector<1x128xf32>
    %60 = vector.shape_cast %47 : vector<1x128xf32> to vector<1x1x1x128xf32>
    tpu.vector_store %arg4[%c0_29, %c0_30, %c1_31, %c0_32], %60 {strides = array<i32>} : memref<1x1x2x128xf32, #tpu.memory_space<vmem>>, vector<1x1x1x128xf32>,
    return
  }
  func.func @transform_0(%arg0: i32, %arg1: i32) -> (i32, i32, i32, i32) {
    %c0_i32 = arith.constant 0 : i32
    %c0_i32_0 = arith.constant 0 : i32
    %c0_i32_1 = arith.constant 0 : i32
    return %arg0, %c0_i32, %arg1, %c0_i32_0 : i32, i32, i32, i32
  }
  func.func @transform_1(%arg0: i32, %arg1: i32) -> (i32, i32, i32) {
    %c0_i32 = arith.constant 0 : i32
    %c0_i32_0 = arith.constant 0 : i32
    return %arg0, %arg1, %c0_i32 : i32, i32, i32
  }
  func.func @transform_2(%arg0: i32, %arg1: i32) -> (i32, i32, i32, i32) {
    %c0_i32 = arith.constant 0 : i32
    %c0_i32_0 = arith.constant 0 : i32
    %c0_i32_1 = arith.constant 0 : i32
    return %arg0, %arg1, %c0_i32, %c0_i32_0 : i32, i32, i32, i32
  }
}

</mosaic_0001>

<llo_original>
// kernel: tpu_custom_call.1
$region0: #{tpu_custom_call.1}
  #allocation0 [shape = 'u32[]', space=smem, size = 0x4, offset = 0x4, fixed_abs, tag = 'smem constant byte address 0x4 - core index']
  #allocation1 [shape = 'u32[144,128]{1,0:T(1,128)}', space=vmem, size = 0x12000, scoped, tag = 'internal scratch']
  %s0 = inlined_call_operand.hbm [shape: f32[2,3,4,128], index: 0, kind: input, shape index: {}]
  %s1 = inlined_call_operand.hbm [shape: s32[2,4,128], index: 1, kind: input, shape index: {}]
  %s2 = inlined_call_operand.hbm [shape: f32[2,1,2,128], index: 2, kind: output, shape index: {}]
  %s3 = sld [smem:[#allocation0]]
  $region49: #{tpu_custom_call.1} parent=0
    _
  %s5 = ssub.s32 1, %s3
  %s6 = scalar_select 0, %s5, %s3
  $region1: #{tpu_custom_call.1} parent=0
    #allocation2 [shape = 'u8[12288]{0}', space=vmem, size = 0x3000, scoped, tag = 'input window, operand 0']
    #allocation3 [shape = 's32[2]{0}', space=sflag, size = 0x8, scoped, tag = 'scoped memory for tpu_custom_call.1']
    #allocation4 [shape = 's32[2]{0}', space=sflag, size = 0x8, scoped, tag = 'scoped memory for tpu_custom_call.1']
    #allocation5 [shape = 'u8[4096]{0}', space=vmem, size = 0x1000, scoped, tag = 'input window, operand 1']
    #allocation6 [shape = 's32[2]{0}', space=sflag, size = 0x8, scoped, tag = 'scoped memory for tpu_custom_call.1']
    #allocation7 [shape = 'u8[2048]{0}', space=vmem, size = 0x800, scoped, tag = 'output window, operand 0']
    %7 = vsyncpa [#allocation3], 0
    %s8 = scalar_lea.sflag [#allocation3], 1
    %9 = vsyncpa %s8, 0
    %10 = vsyncpa [#allocation6], 0
    %s11 = scalar_lea.sflag [#allocation6], 1
    %12 = vsyncpa %s11, 0
    %13 = vsyncpa [#allocation4], 0
    %s14 = scalar_lea.sflag [#allocation4], 1
    %15 = vsyncpa %s14, 0
    loop: start=0, step=1, limit=4
    $region2: #{tpu_custom_call.1} parent=1 // loop_pre_header
      _
    $region3: #{tpu_custom_call.1} parent=1 // loop_header
      %s17 = sphi 0, %s21
      %p18 = scmp.ge.s32.totalorder %s17, 4
      %s24 = sphi 0, %s36
      %s25 = sphi 0, %s32
      %s26 = sphi 0, %s24
      %s27 = sphi 0, %s25
      %s28 = sphi 0, %s26
      %s29 = sphi 0, %s27
      %s41 = sphi 0, %s43
      %s44 = sphi 0, %s41
      %s45 = sphi 0, %s44
      %s61 = sphi 0, %s45
      %s69 = sphi 0, %s71
      %s72 = sphi 0, %s69
      %s73 = sphi 0, %s72
      %s89 = sphi 0, %s73
      %s97 = sphi 0, %s99
      %s100 = sphi 0, %s97
      %s101 = sphi 0, %s100
      %s117 = sphi 0, %s101
    $region4: #{tpu_custom_call.1} parent=1 // loop_header_branch
      %20 = sbr.rel (%p18) target = $region8
    $region5: #{tpu_custom_call.1} parent=1 // loop_body
      %s22 = ssub.s32 %s17, 1
      %s23 = ssub.s32 %s17, 2
      %s30 = sadd.s32 1, %s25
      %p31 = scmp.ge.s32.totalorder %s30, 1
      %s32 = scalar_select %p31, 0, %s30
      %s33 = sadd.s32 1, %s24
      %s34 = scalar_select %p31, %s33, %s24
      %p35 = scmp.ge.s32.totalorder %s34, 2
      %s36 = scalar_select %p35, 0, %s34
      %s37 = ssub.s32 %s24, %s36
      %s38 = ssub.s32 %s25, %s32
      %s39 = sor.u32 %s37, %s38
      %p40 = scmp.eq.s32.totalorder %s39, 0
      %s42 = sadd.s32 %s41, 1
      %s43 = scalar_select %p40, %s41, %s42
      %p46 = pneg %p40
      %p47 = scmp.eq.s32.totalorder %s17, 1
      %p48 = por %p46, %p47
      %p49 = scmp.ne.s32.totalorder %s41, %s44
      %p50 = scmp.eq.s32.totalorder %s17, 0
      %p51 = por %p49, %p50
      %p52 = scmp.ne.s32.totalorder %s41, %s44
      %p53 = scmp.eq.s32.totalorder %s22, 1
      %p54 = por %p52, %p53
      %p55 = scmp.ne.s32.totalorder %s44, %s45
      %p56 = scmp.eq.s32.totalorder %s22, 0
      %p57 = por %p55, %p56
      %p58 = scmp.ne.s32.totalorder %s44, %s45
      %p59 = scmp.eq.s32.totalorder %s23, 1
      %p60 = por %p58, %p59
      %p62 = scmp.ne.s32.totalorder %s45, %s61
      %p63 = scmp.eq.s32.totalorder %s23, 0
      %p64 = por %p62, %p63
      %s65 = ssub.s32 %s24, %s36
      %s66 = ssub.s32 %s25, %s32
      %s67 = sor.u32 %s65, %s66
      %p68 = scmp.eq.s32.totalorder %s67, 0
      %s70 = sadd.s32 %s69, 1
      %s71 = scalar_select %p68, %s69, %s70
      %p74 = pneg %p68
      %p75 = scmp.eq.s32.totalorder %s17, 1
      %p76 = por %p74, %p75
      %p77 = scmp.ne.s32.totalorder %s69, %s72
      %p78 = scmp.eq.s32.totalorder %s17, 0
      %p79 = por %p77, %p78
      %p80 = scmp.ne.s32.totalorder %s69, %s72
      %p81 = scmp.eq.s32.totalorder %s22, 1
      %p82 = por %p80, %p81
      %p83 = scmp.ne.s32.totalorder %s72, %s73
      %p84 = scmp.eq.s32.totalorder %s22, 0
      %p85 = por %p83, %p84
      %p86 = scmp.ne.s32.totalorder %s72, %s73
      %p87 = scmp.eq.s32.totalorder %s23, 1
      %p88 = por %p86, %p87
      %p90 = scmp.ne.s32.totalorder %s73, %s89
      %p91 = scmp.eq.s32.totalorder %s23, 0
      %p92 = por %p90, %p91
      %s93 = ssub.s32 %s24, %s36
      %s94 = ssub.s32 %s25, %s32
      %s95 = sor.u32 %s93, %s94
      %p96 = scmp.eq.s32.totalorder %s95, 0
      %s98 = sadd.s32 %s97, 1
      %s99 = scalar_select %p96, %s97, %s98
      %p102 = pneg %p96
      %p103 = scmp.eq.s32.totalorder %s17, 1
      %p104 = por %p102, %p103
      %p105 = scmp.ne.s32.totalorder %s97, %s100
      %p106 = scmp.eq.s32.totalorder %s17, 0
      %p107 = por %p105, %p106
      %p108 = scmp.ne.s32.totalorder %s97, %s100
      %p109 = scmp.eq.s32.totalorder %s22, 1
      %p110 = por %p108, %p109
      %p111 = scmp.ne.s32.totalorder %s100, %s101
      %p112 = scmp.eq.s32.totalorder %s22, 0
      %p113 = por %p111, %p112
      %p114 = scmp.ne.s32.totalorder %s100, %s101
      %p115 = scmp.eq.s32.totalorder %s23, 1
      %p116 = por %p114, %p115
      %p118 = scmp.ne.s32.totalorder %s101, %s117
      %p119 = scmp.eq.s32.totalorder %s23, 0
      %p120 = por %p118, %p119
      %p121 = scmp.le.s32.totalorder 1, %s17
      %p122 = scmp.lt.s32.totalorder %s17, 3
      %p123 = pnand %p121, %p122
      %p124 = pneg %p123
      // Predicated region
      $region9: #{tpu_custom_call.1} parent=5 // pred_check
        _
      $region10: #{tpu_custom_call.1} parent=5 // pred_check_branch
        %126 = sbr.rel (%p123) target = $region12
      $region11: #{tpu_custom_call.1} parent=5 // pred_region
        %s127 = ssub.s32 %s17, 1
      $region12: #{tpu_custom_call.1} parent=5 // pred_fallthru
        _
      %p128 = scmp.lt.s32.totalorder %s17, 2
      // Predicated region
      $region13: #{tpu_custom_call.1} parent=5 // pred_check
        %p129 = pneg %p128
      $region14: #{tpu_custom_call.1} parent=5 // pred_check_branch
        %131 = sbr.rel (%p129) target = $region16
      $region15: #{tpu_custom_call.1} parent=5 // pred_region
        // Predicated region
        $region17: #{tpu_custom_call.1} parent=15 // pred_check
          %p132 = pneg %p51
        $region18: #{tpu_custom_call.1} parent=15 // pred_check_branch
          %134 = sbr.rel (%p132) target = $region20
        $region19: #{tpu_custom_call.1} parent=15 // pred_region
          %s135 = sand.u32 %s41, 1
          %s136 = scalar_lea.sflag [#allocation3], %s135
          %s137 = sand.u32 %s41, 1
          %s138 = smul.addr %s137, 12
          %s139 = scalar_lea.vmem [#allocation2], %s138
          %s141 = ssub.s32 192, 192
          %142 = vsyncadd %s136, %s141
          %s143 = smul.addr %s24, 3
          %s144 = sadd.s32 %s25, %s143
          %s145 = smul.addr %s144, 64
          %s146 = scalar_lea.hbm %s0, %s145
          %s147 = sshll.u32 %s139, 4
          %s148 = int_to_ptr.vmem [resolvable:$true] %s147
          %153 = dma.hbm_to_vmem [thread:$0]  %s146, 192, %s148, %s136, 64, 64, 4
        $region20: #{tpu_custom_call.1} parent=15 // pred_fallthru
          _
        // Predicated region
        $region21: #{tpu_custom_call.1} parent=15 // pred_check
          %p154 = pneg %p79
        $region22: #{tpu_custom_call.1} parent=15 // pred_check_branch
          %156 = sbr.rel (%p154) target = $region24
        $region23: #{tpu_custom_call.1} parent=15 // pred_region
          %s157 = sand.u32 %s69, 1
          %s158 = scalar_lea.sflag [#allocation6], %s157
          %s159 = sand.u32 %s69, 1
          %s160 = smul.addr %s159, 4
          %s161 = scalar_lea.vmem [#allocation5], %s160
          %s163 = ssub.s32 64, 64
          %164 = vsyncadd %s158, %s163
          %s165 = sadd.s32 %s25, %s24
          %s166 = smul.addr %s165, 64
          %s167 = scalar_lea.hbm %s1, %s166
          %s169 = sshll.u32 %s161, 4
          %s170 = int_to_ptr.vmem [resolvable:$true] %s169
          %172 = dma.hbm_to_vmem [thread:$0]  %s167, 64, %s170, %s158
        $region24: #{tpu_custom_call.1} parent=15 // pred_fallthru
          _
      $region16: #{tpu_custom_call.1} parent=5 // pred_fallthru
        _
      %p173 = scmp.le.s32.totalorder 1, %s17
      %p174 = scmp.lt.s32.totalorder %s17, 3
      %p175 = pnand %p173, %p174
      %p176 = pneg %p175
      // Predicated region
      $region25: #{tpu_custom_call.1} parent=5 // pred_check
        _
      $region26: #{tpu_custom_call.1} parent=5 // pred_check_branch
        %178 = sbr.rel (%p175) target = $region28
      $region27: #{tpu_custom_call.1} parent=5 // pred_region
        %s179 = ssub.s32 %s17, 1
        %s180 = sand.u32 %s44, 1
        %s181 = scalar_lea.sflag [#allocation3], %s180
        %s182 = sand.u32 %s44, 1
        %s183 = smul.addr %s182, 12
        %s184 = scalar_lea.vmem [#allocation2], %s183
        // Predicated region
        $region29: #{tpu_custom_call.1} parent=27 // pred_check
          %p185 = pneg %p57
        $region30: #{tpu_custom_call.1} parent=27 // pred_check_branch
          %187 = sbr.rel (%p185) target = $region32
        $region31: #{tpu_custom_call.1} parent=27 // pred_region
          %188 = dma.done %s181, 192
        $region32: #{tpu_custom_call.1} parent=27 // pred_fallthru
          _
        %s189 = sand.u32 %s72, 1
        %s190 = scalar_lea.sflag [#allocation6], %s189
        %s191 = sand.u32 %s72, 1
        %s192 = smul.addr %s191, 4
        %s193 = scalar_lea.vmem [#allocation5], %s192
        // Predicated region
        $region33: #{tpu_custom_call.1} parent=27 // pred_check
          %p194 = pneg %p85
        $region34: #{tpu_custom_call.1} parent=27 // pred_check_branch
          %196 = sbr.rel (%p194) target = $region36
        $region35: #{tpu_custom_call.1} parent=27 // pred_region
          %197 = dma.done %s190, 64
        $region36: #{tpu_custom_call.1} parent=27 // pred_fallthru
          _
        %s198 = sand.u32 %s44, 1
        %s199 = scalar_lea.sflag [#allocation3], %s198
        %s200 = sand.u32 %s44, 1
        %s201 = smul.addr %s200, 12
        %s202 = scalar_lea.vmem [#allocation2], %s201
        %p203 = pneg %p57
        %p204 = pneg %p54
        %s205 = sand.u32 %s72, 1
        %s206 = scalar_lea.sflag [#allocation6], %s205
        %s207 = sand.u32 %s72, 1
        %s208 = smul.addr %s207, 4
        %s209 = scalar_lea.vmem [#allocation5], %s208
        %p210 = pneg %p85
        %p211 = pneg %p82
        %p212 = pneg %p113
        %p213 = pneg %p110
        %s214 = sand.u32 %s100, 1
        %s215 = scalar_lea.sflag [#allocation4], %s214
        %s216 = sand.u32 %s100, 1
        %s217 = smul.addr %s216, 2
        %s218 = scalar_lea.vmem [#allocation7], %s217
        %v219 = vld [vmem:[%s193] sm:$0xf]
        %v220 = vld [vmem:[%s184] sm:$0xf]
        %v221 = vxor.u32 %v220, 2147483648
        %v222 = vmul.f32 %v221, 1.442695
        %v223 = vpow.pop %v222
        %v224 = vadd.f32 %v223, 1.0
        %v225 = vrcp.pop %v224
        %v226 = vmul.f32 1.0, %v225
        %vm227 = vcmask 1043456
        %v228 = vsel %vm227, %v226, 0.0
        %v229 = vrot.slane %v228, 4
        %v230 = vadd.f32 %v228, %v229
        %v231 = vrot.slane %v230, 2
        %v232 = vadd.f32 %v230, %v231
        %v233 = vrot.slane %v232, 1
        %v234 = vadd.f32 %v232, %v233
        %v235 = vadd.f32 %v234, 0.0
        %vm236 = vcmp.eq.s32.totalorder %v219, 0
        %v237 = vsel %vm236, %v226, 0.0
        %v238 = vsel %vm227, %v237, 0.0
        %v239 = vrot.slane %v238, 4
        %v240 = vadd.f32 %v238, %v239
        %v241 = vrot.slane %v240, 2
        %v242 = vadd.f32 %v240, %v241
        %v243 = vrot.slane %v242, 1
        %v244 = vadd.f32 %v242, %v243
        %v245 = vadd.f32 %v244, 0.0
        %s246 = scalar_lea.vmem %s184, 4 [#allocation2]
        %v247 = vld [vmem:[%s246] sm:$0xf]
        %v248 = vxor.u32 %v247, 2147483648
        %v249 = vmul.f32 %v248, 1.442695
        %v250 = vpow.pop %v249
        %v251 = vadd.f32 %v250, 1.0
        %v252 = vrcp.pop %v251
        %v253 = vmul.f32 1.0, %v252
        %v254 = vsel %vm227, %v253, 0.0
        %v255 = vrot.slane %v254, 4
        %v256 = vadd.f32 %v254, %v255
        %v257 = vrot.slane %v256, 2
        %v258 = vadd.f32 %v256, %v257
        %v259 = vrot.slane %v258, 1
        %v260 = vadd.f32 %v258, %v259
        %v261 = vadd.f32 %v235, %v260
        %vm262 = vcmp.eq.s32.totalorder %v219, 1
        %v263 = vsel %vm262, %v253, 0.0
        %v264 = vsel %vm227, %v263, 0.0
        %v265 = vrot.slane %v264, 4
        %v266 = vadd.f32 %v264, %v265
        %v267 = vrot.slane %v266, 2
        %v268 = vadd.f32 %v266, %v267
        %v269 = vrot.slane %v268, 1
        %v270 = vadd.f32 %v268, %v269
        %v271 = vadd.f32 %v245, %v270
        %s272 = scalar_lea.vmem %s184, 8 [#allocation2]
        %v273 = vld [vmem:[%s272] sm:$0xf]
        %v274 = vxor.u32 %v273, 2147483648
        %v275 = vmul.f32 %v274, 1.442695
        %v276 = vpow.pop %v275
        %v277 = vadd.f32 %v276, 1.0
        %v278 = vrcp.pop %v277
        %v279 = vmul.f32 1.0, %v278
        %v280 = vsel %vm227, %v279, 0.0
        %v281 = vrot.slane %v280, 4
        %v282 = vadd.f32 %v280, %v281
        %v283 = vrot.slane %v282, 2
        %v284 = vadd.f32 %v282, %v283
        %v285 = vrot.slane %v284, 1
        %v286 = vadd.f32 %v284, %v285
        %v287 = vadd.f32 %v261, %v286
        %vm288 = vcmp.eq.s32.totalorder %v219, 2
        %v289 = vsel %vm288, %v279, 0.0
        %v290 = vsel %vm227, %v289, 0.0
        %v291 = vrot.slane %v290, 4
        %v292 = vadd.f32 %v290, %v291
        %v293 = vrot.slane %v292, 2
        %v294 = vadd.f32 %v292, %v293
        %v295 = vrot.slane %v294, 1
        %v296 = vadd.f32 %v294, %v295
        %v297 = vadd.f32 %v271, %v296
        %298 = vst [vmem:[%s218] sm:$0x1] %v297
        %299 = vst [vmem:[%s218 + $0x1] sm:$0x1] %v287
        %s300 = sand.u32 %s100, 1
        %s301 = scalar_lea.sflag [#allocation4], %s300
        %s302 = sand.u32 %s100, 1
        %s303 = smul.addr %s302, 2
        %s304 = scalar_lea.vmem [#allocation7], %s303
        // Predicated region
        $region37: #{tpu_custom_call.1} parent=27 // pred_check
          %p305 = pneg %p110
        $region38: #{tpu_custom_call.1} parent=27 // pred_check_branch
          %307 = sbr.rel (%p305) target = $region40
        $region39: #{tpu_custom_call.1} parent=27 // pred_region
          %s309 = ssub.s32 32, 32
          %310 = vsyncadd %s301, %s309
          %s311 = sadd.s32 %s27, %s26
          %s312 = smul.addr %s311, 32
          %s313 = scalar_lea.hbm %s2, %s312
          %s315 = sshll.u32 %s304, 4
          %s316 = int_to_ptr.vmem [resolvable:$true] %s315
          %318 = dma.vmem_to_hbm [thread:$0]  %s316, 32, %s313, %s301
        $region40: #{tpu_custom_call.1} parent=27 // pred_fallthru
          _
      $region28: #{tpu_custom_call.1} parent=5 // pred_fallthru
        _
      %p319 = scmp.le.s32.totalorder 2, %s17
      // Predicated region
      $region41: #{tpu_custom_call.1} parent=5 // pred_check
        %p320 = pneg %p319
      $region42: #{tpu_custom_call.1} parent=5 // pred_check_branch
        %322 = sbr.rel (%p320) target = $region44
      $region43: #{tpu_custom_call.1} parent=5 // pred_region
        %s323 = ssub.s32 %s17, 2
        // Predicated region
        $region45: #{tpu_custom_call.1} parent=43 // pred_check
          %p324 = pneg %p116
        $region46: #{tpu_custom_call.1} parent=43 // pred_check_branch
          %326 = sbr.rel (%p324) target = $region48
        $region47: #{tpu_custom_call.1} parent=43 // pred_region
          %s327 = sand.u32 %s101, 1
          %s328 = scalar_lea.sflag [#allocation4], %s327
          %s329 = sand.u32 %s101, 1
          %s330 = smul.addr %s329, 2
          %s331 = scalar_lea.vmem [#allocation7], %s330
          %332 = dma.done %s328, 32
        $region48: #{tpu_custom_call.1} parent=43 // pred_fallthru
          _
      $region44: #{tpu_custom_call.1} parent=5 // pred_fallthru
        _
    $region6: #{tpu_custom_call.1} parent=1 // loop_footer
      %s21 = sadd.s32 1, %s17
    $region7: #{tpu_custom_call.1} parent=1 // loop_footer_branch
      %16 = sbr.rel target = $region3
    $region8: #{tpu_custom_call.1} parent=1 // loop_exit
      _
    %333 = vsyncpa [#allocation3], 1
    %s334 = scalar_lea.sflag [#allocation3], 1
    %335 = vsyncpa %s334, 1
    %336 = vsyncpa [#allocation6], 1
    %s337 = scalar_lea.sflag [#allocation6], 1
    %338 = vsyncpa %s337, 1
    %339 = vsyncpa [#allocation4], 1
    %s340 = scalar_lea.sflag [#allocation4], 1
    %341 = vsyncpa %s340, 1

</llo_original>
